<compile_context>
chip_gen: v5e
topology: v5e:2x2
jax: 0.10.0
libtpu: 0.0.40
codegen_flags: <defaults>
</compile_context>

<pallas_src>
import functools

import jax
import jax.numpy as jnp
import numpy as np
from jax.experimental import pallas as pl
from jax.experimental.pallas import tpu as pltpu

LANES = 128
SUBLANES = 8
_SENTINEL = 2.0  # > any probability and > any sane threshold -> never kept


def _gtprob_kernel(logits_ref, label_ref, prob_ref, *, ignore_index):
    """Per-tile softmax-gather of the GT-class probability.

    Invalid (ignore_index) pixels get the sentinel prob 2.0 so no separate
    validity mask needs to be materialized in HBM.
    """
    x = logits_ref[...].astype(jnp.float32)          # (C, tr, 128)
    m = jnp.max(x, axis=0, keepdims=True)
    e = jnp.exp(x - m)
    denom = jnp.sum(e, axis=0)                       # (tr, 128)
    lab = label_ref[...]                             # (tr, 128) int32
    valid = lab != ignore_index
    lab0 = jnp.where(valid, lab, 0)                  # ignore -> class 0
    cidx = jax.lax.broadcasted_iota(jnp.int32, x.shape, 0)
    numer = jnp.sum(jnp.where(cidx == lab0[None, :, :], e, 0.0), axis=0)
    gt_prob = numer / denom                          # exact divide (see review)
    prob_ref[...] = jnp.where(valid, gt_prob, jnp.float32(_SENTINEL))


def _weight_kernel(thresh_ref, prob_ref, w_ref):
    """weight = 1.0 where (valid and gt_prob < threshold)."""
    t = thresh_ref[0, 0]
    p = prob_ref[...]
    keep = (p < t) & (p < 1.5)       # second clause rejects the 2.0 sentinel
    w_ref[...] = keep.astype(w_ref.dtype)


def _pick_row_tile(rows, channels):
    """Rows-per-block: big enough to amortize per-step overhead, small enough
    that the double-buffered logits block stays well inside the 32 MiB scoped
    VMEM default (v7x only has 64 MiB physical)."""
    if rows <= SUBLANES:
        return rows                                   # full row axis, one block
    budget = 12 * 1024 * 1024                         # double-buffered logits
    tr = min(512, (rows // SUBLANES) * SUBLANES)
    while tr > SUBLANES and 2 * channels * tr * LANES * 4 > budget:
        tr //= 2
    return max(tr, SUBLANES)


def ohem_forward(seg_logit, seg_label, *, ratio, ignore_index, min_kept,
                 thresh):
    del ratio  # unused by the forward pass (as in the PyTorch module)
    N, C, H, W = seg_logit.shape
    assert seg_label.shape == (N, 1, H, W)
    out_dtype = seg_logit.dtype

    HW = H * W
    rows = pl.cdiv(HW, LANES)
    tr = _pick_row_tile(rows, C)
    rows_pad = pl.cdiv(rows, tr) * tr
    HW_pad = rows_pad * LANES

    # (N, C, H, W) -> (N, C, HW): pure reshape, no HBM transpose.
    logits = seg_logit.reshape(N, C, HW)
    label = seg_label.reshape(N, HW).astype(jnp.int32)
    if HW_pad != HW:
        logits = jnp.pad(logits, ((0, 0), (0, 0), (0, HW_pad - HW)))
        label = jnp.pad(label, ((0, 0), (0, HW_pad - HW)),
                        constant_values=ignore_index)
    logits = logits.reshape(N, C, rows_pad, LANES)
    label = label.reshape(N, rows_pad, LANES)

    grid = (N, rows_pad // tr)

    prob = pl.pallas_call(
        functools.partial(_gtprob_kernel, ignore_index=ignore_index),
        out_shape=jax.ShapeDtypeStruct((N, rows_pad, LANES), jnp.float32),
        grid=grid,
        in_specs=[
            pl.BlockSpec((None, C, tr, LANES), lambda n, i: (n, 0, i, 0)),
            pl.BlockSpec((None, tr, LANES), lambda n, i: (n, i, 0)),
        ],
        out_specs=pl.BlockSpec((None, tr, LANES), lambda n, i: (n, i, 0)),
        compiler_params=pltpu.CompilerParams(
            dimension_semantics=("parallel", "parallel")),
    )(logits, label)

    # TODO(synk): global k-th-smallest selection over all valid pixels has no
    # clean Pallas TPU equivalent; done with plain JAX (top_k) glue here.
    prob_flat = prob.reshape(-1)
    p_total = prob_flat.shape[0]
    n_valid = jnp.sum((prob_flat < 1.5).astype(jnp.int32))
    batch_kept = min_kept * N
    k = min(batch_kept + 1, p_total)
    neg_top, _ = jax.lax.top_k(-prob_flat, k)
    smallest = -neg_top                               # k smallest, ascending
    idx = jnp.clip(jnp.minimum(batch_kept, n_valid - 1), 0, k - 1)
    min_threshold = jnp.where(n_valid > 0, smallest[idx], jnp.float32(0.0))
    threshold = jnp.maximum(min_threshold, jnp.float32(thresh))

    weight = pl.pallas_call(
        _weight_kernel,
        out_shape=jax.ShapeDtypeStruct((N, rows_pad, LANES), out_dtype),
        grid=grid,
        in_specs=[
            pl.BlockSpec(memory_space=pltpu.MemorySpace.SMEM),
            pl.BlockSpec((None, tr, LANES), lambda n, i: (n, i, 0)),
        ],
        out_specs=pl.BlockSpec((None, tr, LANES), lambda n, i: (n, i, 0)),
        compiler_params=pltpu.CompilerParams(
            dimension_semantics=("parallel", "parallel")),
    )(threshold.reshape(1, 1).astype(jnp.float32), prob)

    return weight.reshape(N, HW_pad)[:, :HW].reshape(N, H, W)


def _ohem_ref(seg_logit, seg_label, *, ignore_index, min_kept, thresh):
    """Pure-JAX reference mirroring the PyTorch forward."""
    N, C, H, W = seg_logit.shape
    label = seg_label.reshape(N, H, W).astype(jnp.int32)
    valid = label != ignore_index
    prob = jax.nn.softmax(seg_logit.astype(jnp.float32), axis=1)
    lab0 = jnp.where(valid, label, 0)
    gt_prob = jnp.take_along_axis(prob, lab0[:, None], axis=1)[:, 0]
    flat_prob = gt_prob.reshape(-1)
    flat_valid = valid.reshape(-1)
    n_valid = jnp.sum(flat_valid.astype(jnp.int32))
    sorted_p = jnp.sort(jnp.where(flat_valid, flat_prob, jnp.inf))
    batch_kept = min_kept * N
    idx = jnp.clip(jnp.minimum(batch_kept, n_valid - 1), 0,
                   flat_prob.shape[0] - 1)
    min_thr = jnp.where(n_valid > 0, sorted_p[idx], jnp.float32(0.0))
    thr = jnp.maximum(min_thr, jnp.float32(thresh))
    w = jnp.where(valid & (gt_prob < thr), 1.0, 0.0)
    return w.astype(seg_logit.dtype)


if __name__ == "__main__":
    # Module hyperparameters (deterministic; OHEM has no learned weights).
    ratio = 0.75
    ignore_index = 255
    min_kept = 100          # batch_kept = min_kept * N
    thresh = 0.7

    N, C, H, W = 2, 4, 16, 16
    key = jax.random.PRNGKey(0)
    k1, k2, k3 = jax.random.split(key, 3)
    seg_logit = jax.random.normal(k1, (N, C, H, W), dtype=jnp.float32)
    labels = jax.random.randint(k2, (N, 1, H, W), 0, C)
    ignore = jax.random.uniform(k3, (N, 1, H, W)) < 0.15
    seg_label = jnp.where(ignore, ignore_index, labels).astype(jnp.int32)

    weight = ohem_forward(seg_logit, seg_label, ratio=ratio,
                          ignore_index=ignore_index, min_kept=min_kept,
                          thresh=thresh)
    weight = jax.block_until_ready(weight)

    ref = _ohem_ref(seg_logit, seg_label, ignore_index=ignore_index,
                    min_kept=min_kept, thresh=thresh)
    assert weight.shape == (N, H, W)
    np.testing.assert_allclose(np.asarray(weight), np.asarray(ref),
                               rtol=1e-5, atol=1e-5)
    print("KERNEL_OK")
</pallas_src>

<mosaic_0001>
module attributes {stable_mosaic.version = 11 : i64} {
  func.func @_gtprob_kernel(%arg0: i32, %arg1: i32, %arg2: memref<1x4x2x128xf32, #tpu.memory_space<vmem>>, %arg3: memref<1x2x128xi32, #tpu.memory_space<vmem>>, %arg4: memref<1x2x128xf32, #tpu.memory_space<vmem>>) attributes {dimension_semantics = [#tpu.dimension_semantics<parallel>, #tpu.dimension_semantics<parallel>], iteration_bounds = array<i64: 2, 1>, scalar_prefetch = 0 : i64, scratch_operands = 0 : i64, tpu.core_type = #tpu.core_type<tc>, window_params = [{transform_indices = @transform_0, window_bounds = array<i64: 1, 4, 2, 128>}, {transform_indices = @transform_1, window_bounds = array<i64: 1, 2, 128>}, {transform_indices = @transform_2, window_bounds = array<i64: 1, 2, 128>}]} {
    %c0 = arith.constant 0 : index
    %c0_0 = arith.constant 0 : index
    %c0_1 = arith.constant 0 : index
    %c0_2 = arith.constant 0 : index
    %0 = vector.load %arg2[%c0, %c0_0, %c0_1, %c0_2] : memref<1x4x2x128xf32, #tpu.memory_space<vmem>>, vector<1x4x2x128xf32>
    %1 = vector.shape_cast %0 : vector<1x4x2x128xf32> to vector<4x2x128xf32>
    %cst = arith.constant dense<0xFF800000> : vector<2x128xf32>
    %2 = vector.multi_reduction <maximumf>, %1, %cst [0] : vector<4x2x128xf32> to vector<2x128xf32>
    %3 = vector.shape_cast %2 : vector<2x128xf32> to vector<1x2x128xf32>
    %4 = vector.broadcast %3 : vector<1x2x128xf32> to vector<4x2x128xf32>
    %5 = arith.subf %1, %4 : vector<4x2x128xf32>
    %6 = math.exp %5 : vector<4x2x128xf32>
    %cst_3 = arith.constant dense<0.000000e+00> : vector<2x128xf32>
    %7 = vector.multi_reduction <add>, %6, %cst_3 [0] : vector<4x2x128xf32> to vector<2x128xf32>
    %c0_4 = arith.constant 0 : index
    %c0_5 = arith.constant 0 : index
    %c0_6 = arith.constant 0 : index
    %8 = vector.load %arg3[%c0_4, %c0_5, %c0_6] : memref<1x2x128xi32, #tpu.memory_space<vmem>>, vector<1x2x128xi32>
    %9 = vector.shape_cast %8 : vector<1x2x128xi32> to vector<2x128xi32>
    %c255_i32 = arith.constant 255 : i32
    %10 = vector.broadcast %c255_i32 : i32 to vector<2x128xi32>
    %11 = arith.cmpi ne, %9, %10 : vector<2x128xi32>
    %c0_i32 = arith.constant 0 : i32
    %12 = vector.broadcast %c0_i32 : i32 to vector<2x128xi32>
    %13 = arith.select %11, %9, %12 : vector<2x128xi1>, vector<2x128xi32>
    %14 = tpu.iota {dimensions = array<i32: 0>} : vector<4x2x128xi32>
    %15 = vector.shape_cast %13 : vector<2x128xi32> to vector<1x2x128xi32>
    %16 = vector.broadcast %15 : vector<1x2x128xi32> to vector<4x2x128xi32>
    %17 = arith.cmpi eq, %14, %16 : vector<4x2x128xi32>
    %cst_7 = arith.constant 0.000000e+00 : f32
    %18 = vector.broadcast %cst_7 : f32 to vector<4x2x128xf32>
    %19 = arith.select %17, %6, %18 : vector<4x2x128xi1>, vector<4x2x128xf32>
    %cst_8 = arith.constant dense<0.000000e+00> : vector<2x128xf32>
    %20 = vector.multi_reduction <add>, %19, %cst_8 [0] : vector<4x2x128xf32> to vector<2x128xf32>
    %21 = arith.divf %20, %7 : vector<2x128xf32>
    %cst_9 = arith.constant 2.000000e+00 : f32
    %22 = vector.broadcast %cst_9 : f32 to vector<2x128xf32>
    %23 = arith.select %11, %21, %22 : vector<2x128xi1>, vector<2x128xf32>
    %c0_10 = arith.constant 0 : index
    %c0_11 = arith.constant 0 : index
    %c0_12 = arith.constant 0 : index
    %24 = vector.load %arg4[%c0_10, %c0_11, %c0_12] : memref<1x2x128xf32, #tpu.memory_space<vmem>>, vector<1x2x128xf32>
    %25 = vector.shape_cast %24 : vector<1x2x128xf32> to vector<2x128xf32>
    %26 = vector.shape_cast %23 : vector<2x128xf32> to vector<1x2x128xf32>
    tpu.vector_store %arg4[%c0_10, %c0_11, %c0_12], %26 {strides = array<i32>} : memref<1x2x128xf32, #tpu.memory_space<vmem>>, vector<1x2x128xf32>,
    return
  }
  func.func @transform_0(%arg0: i32, %arg1: i32) -> (i32, i32, i32, i32) {
    %c0_i32 = arith.constant 0 : i32
    %c0_i32_0 = arith.constant 0 : i32
    %c0_i32_1 = arith.constant 0 : i32
    return %arg0, %c0_i32, %arg1, %c0_i32_0 : i32, i32, i32, i32
  }
  func.func @transform_1(%arg0: i32, %arg1: i32) -> (i32, i32, i32) {
    %c0_i32 = arith.constant 0 : i32
    %c0_i32_0 = arith.constant 0 : i32
    return %arg0, %arg1, %c0_i32 : i32, i32, i32
  }
  func.func @transform_2(%arg0: i32, %arg1: i32) -> (i32, i32, i32) {
    %c0_i32 = arith.constant 0 : i32
    %c0_i32_0 = arith.constant 0 : i32
    return %arg0, %arg1, %c0_i32 : i32, i32, i32
  }
}

</mosaic_0001>

<llo_original>
// kernel: tpu_custom_call.1
$region0: #{tpu_custom_call.1}
  #allocation0 [shape = 'u32[]', space=smem, size = 0x4, offset = 0x4, fixed_abs, tag = 'smem constant byte address 0x4 - core index']
  #allocation1 [shape = 'u32[72,128]{1,0:T(1,128)}', space=vmem, size = 0x9000, scoped, tag = 'internal scratch']
  %s0 = inlined_call_operand.hbm [shape: f32[2,4,2,128], index: 0, kind: input, shape index: {}]
  %s1 = inlined_call_operand.hbm [shape: s32[2,2,128], index: 1, kind: input, shape index: {}]
  %s2 = inlined_call_operand.hbm [shape: f32[2,2,128], index: 2, kind: output, shape index: {}]
  %s3 = sld [smem:[#allocation0]]
  $region49: #{tpu_custom_call.1} parent=0
    _
  %s5 = ssub.s32 1, %s3
  %s6 = scalar_select 0, %s5, %s3
  $region1: #{tpu_custom_call.1} parent=0
    #allocation2 [shape = 'u8[8192]{0}', space=vmem, size = 0x2000, scoped, tag = 'input window, operand 0']
    #allocation3 [shape = 's32[2]{0}', space=sflag, size = 0x8, scoped, tag = 'scoped memory for tpu_custom_call.1']
    #allocation4 [shape = 's32[2]{0}', space=sflag, size = 0x8, scoped, tag = 'scoped memory for tpu_custom_call.1']
    #allocation5 [shape = 'u8[2048]{0}', space=vmem, size = 0x800, scoped, tag = 'input window, operand 1']
    #allocation6 [shape = 's32[2]{0}', space=sflag, size = 0x8, scoped, tag = 'scoped memory for tpu_custom_call.1']
    #allocation7 [shape = 'u8[2048]{0}', space=vmem, size = 0x800, scoped, tag = 'output window, operand 0']
    %7 = vsyncpa [#allocation3], 0
    %s8 = scalar_lea.sflag [#allocation3], 1
    %9 = vsyncpa %s8, 0
    %10 = vsyncpa [#allocation6], 0
    %s11 = scalar_lea.sflag [#allocation6], 1
    %12 = vsyncpa %s11, 0
    %13 = vsyncpa [#allocation4], 0
    %s14 = scalar_lea.sflag [#allocation4], 1
    %15 = vsyncpa %s14, 0
    loop: start=0, step=1, limit=4
    $region2: #{tpu_custom_call.1} parent=1 // loop_pre_header
      _
    $region3: #{tpu_custom_call.1} parent=1 // loop_header
      %s17 = sphi 0, %s21
      %p18 = scmp.ge.s32.totalorder %s17, 4
      %s24 = sphi 0, %s36
      %s25 = sphi 0, %s32
      %s26 = sphi 0, %s24
      %s27 = sphi 0, %s25
      %s28 = sphi 0, %s26
      %s29 = sphi 0, %s27
      %s41 = sphi 0, %s43
      %s44 = sphi 0, %s41
      %s45 = sphi 0, %s44
      %s61 = sphi 0, %s45
      %s69 = sphi 0, %s71
      %s72 = sphi 0, %s69
      %s73 = sphi 0, %s72
      %s89 = sphi 0, %s73
      %s97 = sphi 0, %s99
      %s100 = sphi 0, %s97
      %s101 = sphi 0, %s100
      %s117 = sphi 0, %s101
    $region4: #{tpu_custom_call.1} parent=1 // loop_header_branch
      %20 = sbr.rel (%p18) target = $region8
    $region5: #{tpu_custom_call.1} parent=1 // loop_body
      %s22 = ssub.s32 %s17, 1
      %s23 = ssub.s32 %s17, 2
      %s30 = sadd.s32 1, %s25
      %p31 = scmp.ge.s32.totalorder %s30, 1
      %s32 = scalar_select %p31, 0, %s30
      %s33 = sadd.s32 1, %s24
      %s34 = scalar_select %p31, %s33, %s24
      %p35 = scmp.ge.s32.totalorder %s34, 2
      %s36 = scalar_select %p35, 0, %s34
      %s37 = ssub.s32 %s24, %s36
      %s38 = ssub.s32 %s25, %s32
      %s39 = sor.u32 %s37, %s38
      %p40 = scmp.eq.s32.totalorder %s39, 0
      %s42 = sadd.s32 %s41, 1
      %s43 = scalar_select %p40, %s41, %s42
      %p46 = pneg %p40
      %p47 = scmp.eq.s32.totalorder %s17, 1
      %p48 = por %p46, %p47
      %p49 = scmp.ne.s32.totalorder %s41, %s44
      %p50 = scmp.eq.s32.totalorder %s17, 0
      %p51 = por %p49, %p50
      %p52 = scmp.ne.s32.totalorder %s41, %s44
      %p53 = scmp.eq.s32.totalorder %s22, 1
      %p54 = por %p52, %p53
      %p55 = scmp.ne.s32.totalorder %s44, %s45
      %p56 = scmp.eq.s32.totalorder %s22, 0
      %p57 = por %p55, %p56
      %p58 = scmp.ne.s32.totalorder %s44, %s45
      %p59 = scmp.eq.s32.totalorder %s23, 1
      %p60 = por %p58, %p59
      %p62 = scmp.ne.s32.totalorder %s45, %s61
      %p63 = scmp.eq.s32.totalorder %s23, 0
      %p64 = por %p62, %p63
      %s65 = ssub.s32 %s24, %s36
      %s66 = ssub.s32 %s25, %s32
      %s67 = sor.u32 %s65, %s66
      %p68 = scmp.eq.s32.totalorder %s67, 0
      %s70 = sadd.s32 %s69, 1
      %s71 = scalar_select %p68, %s69, %s70
      %p74 = pneg %p68
      %p75 = scmp.eq.s32.totalorder %s17, 1
      %p76 = por %p74, %p75
      %p77 = scmp.ne.s32.totalorder %s69, %s72
      %p78 = scmp.eq.s32.totalorder %s17, 0
      %p79 = por %p77, %p78
      %p80 = scmp.ne.s32.totalorder %s69, %s72
      %p81 = scmp.eq.s32.totalorder %s22, 1
      %p82 = por %p80, %p81
      %p83 = scmp.ne.s32.totalorder %s72, %s73
      %p84 = scmp.eq.s32.totalorder %s22, 0
      %p85 = por %p83, %p84
      %p86 = scmp.ne.s32.totalorder %s72, %s73
      %p87 = scmp.eq.s32.totalorder %s23, 1
      %p88 = por %p86, %p87
      %p90 = scmp.ne.s32.totalorder %s73, %s89
      %p91 = scmp.eq.s32.totalorder %s23, 0
      %p92 = por %p90, %p91
      %s93 = ssub.s32 %s24, %s36
      %s94 = ssub.s32 %s25, %s32
      %s95 = sor.u32 %s93, %s94
      %p96 = scmp.eq.s32.totalorder %s95, 0
      %s98 = sadd.s32 %s97, 1
      %s99 = scalar_select %p96, %s97, %s98
      %p102 = pneg %p96
      %p103 = scmp.eq.s32.totalorder %s17, 1
      %p104 = por %p102, %p103
      %p105 = scmp.ne.s32.totalorder %s97, %s100
      %p106 = scmp.eq.s32.totalorder %s17, 0
      %p107 = por %p105, %p106
      %p108 = scmp.ne.s32.totalorder %s97, %s100
      %p109 = scmp.eq.s32.totalorder %s22, 1
      %p110 = por %p108, %p109
      %p111 = scmp.ne.s32.totalorder %s100, %s101
      %p112 = scmp.eq.s32.totalorder %s22, 0
      %p113 = por %p111, %p112
      %p114 = scmp.ne.s32.totalorder %s100, %s101
      %p115 = scmp.eq.s32.totalorder %s23, 1
      %p116 = por %p114, %p115
      %p118 = scmp.ne.s32.totalorder %s101, %s117
      %p119 = scmp.eq.s32.totalorder %s23, 0
      %p120 = por %p118, %p119
      %p121 = scmp.le.s32.totalorder 1, %s17
      %p122 = scmp.lt.s32.totalorder %s17, 3
      %p123 = pnand %p121, %p122
      %p124 = pneg %p123
      // Predicated region
      $region9: #{tpu_custom_call.1} parent=5 // pred_check
        _
      $region10: #{tpu_custom_call.1} parent=5 // pred_check_branch
        %126 = sbr.rel (%p123) target = $region12
      $region11: #{tpu_custom_call.1} parent=5 // pred_region
        %s127 = ssub.s32 %s17, 1
      $region12: #{tpu_custom_call.1} parent=5 // pred_fallthru
        _
      %p128 = scmp.lt.s32.totalorder %s17, 2
      // Predicated region
      $region13: #{tpu_custom_call.1} parent=5 // pred_check
        %p129 = pneg %p128
      $region14: #{tpu_custom_call.1} parent=5 // pred_check_branch
        %131 = sbr.rel (%p129) target = $region16
      $region15: #{tpu_custom_call.1} parent=5 // pred_region
        // Predicated region
        $region17: #{tpu_custom_call.1} parent=15 // pred_check
          %p132 = pneg %p51
        $region18: #{tpu_custom_call.1} parent=15 // pred_check_branch
          %134 = sbr.rel (%p132) target = $region20
        $region19: #{tpu_custom_call.1} parent=15 // pred_region
          %s135 = sand.u32 %s41, 1
          %s136 = scalar_lea.sflag [#allocation3], %s135
          %s137 = sand.u32 %s41, 1
          %s138 = smul.addr %s137, 8
          %s139 = scalar_lea.vmem [#allocation2], %s138
          %141 = vsyncadd %s136, 0
          %s142 = smul.addr %s24, 4
          %s143 = sadd.s32 %s25, %s142
          %s144 = smul.addr %s143, 2
          %s145 = scalar_lea.hbm %s0, %s144
          %s146 = sshll.u32 %s145, 4
          %s147 = int_to_ptr.hbm [resolvable:$true] %s146
          %s148 = sshll.u32 %s139, 4
          %s149 = int_to_ptr.vmem [resolvable:$true] %s148
          %154 = dma.hbm_to_vmem [thread:$0]  %s147, 128, %s149, %s136, 32, 32, 2
        $region20: #{tpu_custom_call.1} parent=15 // pred_fallthru
          _
        // Predicated region
        $region21: #{tpu_custom_call.1} parent=15 // pred_check
          %p155 = pneg %p79
        $region22: #{tpu_custom_call.1} parent=15 // pred_check_branch
          %157 = sbr.rel (%p155) target = $region24
        $region23: #{tpu_custom_call.1} parent=15 // pred_region
          %s158 = sand.u32 %s69, 1
          %s159 = scalar_lea.sflag [#allocation6], %s158
          %s160 = sand.u32 %s69, 1
          %s161 = smul.addr %s160, 2
          %s162 = scalar_lea.vmem [#allocation5], %s161
          %164 = vsyncadd %s159, 0
          %s165 = sadd.s32 %s25, %s24
          %s166 = smul.addr %s165, 2
          %s167 = scalar_lea.hbm %s1, %s166
          %s169 = sshll.u32 %s167, 4
          %s170 = int_to_ptr.hbm [resolvable:$true] %s169
          %s171 = sshll.u32 %s162, 4
          %s172 = int_to_ptr.vmem [resolvable:$true] %s171
          %174 = dma.hbm_to_vmem [thread:$0]  %s170, 32, %s172, %s159
        $region24: #{tpu_custom_call.1} parent=15 // pred_fallthru
          _
      $region16: #{tpu_custom_call.1} parent=5 // pred_fallthru
        _
      %p175 = scmp.le.s32.totalorder 1, %s17
      %p176 = scmp.lt.s32.totalorder %s17, 3
      %p177 = pnand %p175, %p176
      %p178 = pneg %p177
      // Predicated region
      $region25: #{tpu_custom_call.1} parent=5 // pred_check
        _
      $region26: #{tpu_custom_call.1} parent=5 // pred_check_branch
        %180 = sbr.rel (%p177) target = $region28
      $region27: #{tpu_custom_call.1} parent=5 // pred_region
        %s181 = ssub.s32 %s17, 1
        %s182 = sand.u32 %s44, 1
        %s183 = scalar_lea.sflag [#allocation3], %s182
        %s184 = sand.u32 %s44, 1
        %s185 = smul.addr %s184, 8
        %s186 = scalar_lea.vmem [#allocation2], %s185
        // Predicated region
        $region29: #{tpu_custom_call.1} parent=27 // pred_check
          %p187 = pneg %p57
        $region30: #{tpu_custom_call.1} parent=27 // pred_check_branch
          %189 = sbr.rel (%p187) target = $region32
        $region31: #{tpu_custom_call.1} parent=27 // pred_region
          %191 = dma.done %s183, 128
        $region32: #{tpu_custom_call.1} parent=27 // pred_fallthru
          _
        %s192 = sand.u32 %s72, 1
        %s193 = scalar_lea.sflag [#allocation6], %s192
        %s194 = sand.u32 %s72, 1
        %s195 = smul.addr %s194, 2
        %s196 = scalar_lea.vmem [#allocation5], %s195
        // Predicated region
        $region33: #{tpu_custom_call.1} parent=27 // pred_check
          %p197 = pneg %p85
        $region34: #{tpu_custom_call.1} parent=27 // pred_check_branch
          %199 = sbr.rel (%p197) target = $region36
        $region35: #{tpu_custom_call.1} parent=27 // pred_region
          %201 = dma.done %s193, 32
        $region36: #{tpu_custom_call.1} parent=27 // pred_fallthru
          _
        %s202 = sand.u32 %s44, 1
        %s203 = scalar_lea.sflag [#allocation3], %s202
        %s204 = sand.u32 %s44, 1
        %s205 = smul.addr %s204, 8
        %s206 = scalar_lea.vmem [#allocation2], %s205
        %p207 = pneg %p57
        %p208 = pneg %p54
        %s209 = sand.u32 %s72, 1
        %s210 = scalar_lea.sflag [#allocation6], %s209
        %s211 = sand.u32 %s72, 1
        %s212 = smul.addr %s211, 2
        %s213 = scalar_lea.vmem [#allocation5], %s212
        %p214 = pneg %p85
        %p215 = pneg %p82
        %p216 = pneg %p113
        %p217 = pneg %p110
        %s218 = sand.u32 %s100, 1
        %s219 = scalar_lea.sflag [#allocation4], %s218
        %s220 = sand.u32 %s100, 1
        %s221 = smul.addr %s220, 2
        %s222 = scalar_lea.vmem [#allocation7], %s221
        %v223 = vld [vmem:[%s186] sm:$0x3]
        %v224 = vld [vmem:[%s186 + $0x2] sm:$0x3]
        %v225 = vld [vmem:[%s186 + $0x4] sm:$0x3]
        %v226 = vld [vmem:[%s186 + $0x6] sm:$0x3]
        %vm227 = vcmask 1041408
        %v228 = vsel %vm227, %v223, -inf
        %v229 = vsel %vm227, %v224, -inf
        %v230 = vsel %vm227, %v225, -inf
        %v231 = vsel %vm227, %v226, -inf
        %v232 = vmax.f32 %v228, %v229
        %v233 = vmax.f32 %v230, %v231
        %v234 = vmax.f32 %v232, %v233
        %v235 = vsub.f32 %v223, %v234
        %v236 = vsub.f32 %v224, %v234
        %v237 = vsub.f32 %v225, %v234
        %v238 = vsub.f32 %v226, %v234
        %v239 = vmul.f32 %v235, 1.442695
        %v240 = vpow.pop %v239
        %v241 = vmul.f32 %v236, 1.442695
        %v242 = vpow.pop %v241
        %v243 = vmul.f32 %v237, 1.442695
        %v244 = vpow.pop %v243
        %v245 = vmul.f32 %v238, 1.442695
        %v246 = vpow.pop %v245
        %v247 = vsel %vm227, %v240, 0.0
        %v248 = vsel %vm227, %v242, 0.0
        %v249 = vadd.f32 %v247, %v248
        %v250 = vsel %vm227, %v244, 0.0
        %v251 = vadd.f32 %v249, %v250
        %v252 = vsel %vm227, %v246, 0.0
        %v253 = vadd.f32 %v251, %v252
        %v254 = vld [vmem:[%s196] sm:$0x3]
        %vm255 = vcmp.ne.s32.totalorder %v254, 255
        %v256 = vsel %vm255, %v254, 0
        %vm257 = vcmp.eq.s32.totalorder %v256, 0
        %vm258 = vcmp.eq.s32.totalorder %v256, 1
        %vm259 = vcmp.eq.s32.totalorder %v256, 2
        %vm260 = vcmp.eq.s32.totalorder %v256, 3
        %v261 = vsel %vm257, %v240, 0.0
        %v262 = vsel %vm258, %v242, 0.0
        %v263 = vsel %vm259, %v244, 0.0
        %v264 = vsel %vm260, %v246, 0.0
        %v265 = vsel %vm227, %v261, 0.0
        %v266 = vsel %vm227, %v262, 0.0
        %v267 = vadd.f32 %v265, %v266
        %v268 = vsel %vm227, %v263, 0.0
        %v269 = vadd.f32 %v267, %v268
        %v270 = vsel %vm227, %v264, 0.0
        %v271 = vadd.f32 %v269, %v270
        %v272 = vrcp.pop %v253
        %v273 = vmul.f32 %v253, %v272
        %v274 = vsub.f32 1.0, %v273
        %v275 = vmul.f32 %v272, %v274
        %v276 = vadd.f32 %v272, %v275
        %vm277 = vweird.f32 %v253
        %vm278 = vweird.f32 %v272
        %vm279 = vmor %vm277, %vm278
        %v280 = vsel %vm279, %v272, %v276
        %v281 = vand.u32 2147483647, %v253
        %vm282 = vcmp.eq.f32.partialorder %v281, 8.507059e+37
        %v283 = vand.u32 %v253, 2147483648
        %v284 = vor.u32 1.1754944e-38, %v283
        %v285 = vsel %vm282, %v284, %v280
        %v286 = vmul.f32 %v271, %v285
        %v287 = vsel %vm255, %v286, 2.0
        %288 = vst [vmem:[%s222] sm:$0x3] %v287
        %s289 = sand.u32 %s100, 1
        %s290 = scalar_lea.sflag [#allocation4], %s289
        %s291 = sand.u32 %s100, 1
        %s292 = smul.addr %s291, 2
        %s293 = scalar_lea.vmem [#allocation7], %s292
        // Predicated region
        $region37: #{tpu_custom_call.1} parent=27 // pred_check
          %p294 = pneg %p110
        $region38: #{tpu_custom_call.1} parent=27 // pred_check_branch
          %296 = sbr.rel (%p294) target = $region40
        $region39: #{tpu_custom_call.1} parent=27 // pred_region
          %298 = vsyncadd %s290, 0
          %s299 = sadd.s32 %s27, %s26
          %s300 = smul.addr %s299, 2
          %s301 = scalar_lea.hbm %s2, %s300
          %s303 = sshll.u32 %s293, 4
          %s304 = int_to_ptr.vmem [resolvable:$true] %s303
          %s305 = sshll.u32 %s301, 4
          %s306 = int_to_ptr.hbm [resolvable:$true] %s305
          %308 = dma.vmem_to_hbm [thread:$0]  %s304, 32, %s306, %s290
        $region40: #{tpu_custom_call.1} parent=27 // pred_fallthru
          _
      $region28: #{tpu_custom_call.1} parent=5 // pred_fallthru
        _
      %p309 = scmp.le.s32.totalorder 2, %s17
      // Predicated region
      $region41: #{tpu_custom_call.1} parent=5 // pred_check
        %p310 = pneg %p309
      $region42: #{tpu_custom_call.1} parent=5 // pred_check_branch
        %312 = sbr.rel (%p310) target = $region44
      $region43: #{tpu_custom_call.1} parent=5 // pred_region
        %s313 = ssub.s32 %s17, 2
        // Predicated region
        $region45: #{tpu_custom_call.1} parent=43 // pred_check
          %p314 = pneg %p116
        $region46: #{tpu_custom_call.1} parent=43 // pred_check_branch
          %316 = sbr.rel (%p314) target = $region48
        $region47: #{tpu_custom_call.1} parent=43 // pred_region
          %s317 = sand.u32 %s101, 1
          %s318 = scalar_lea.sflag [#allocation4], %s317
          %s319 = sand.u32 %s101, 1
          %s320 = smul.addr %s319, 2
          %s321 = scalar_lea.vmem [#allocation7], %s320
          %323 = dma.done %s318, 32
        $region48: #{tpu_custom_call.1} parent=43 // pred_fallthru
          _
      $region44: #{tpu_custom_call.1} parent=5 // pred_fallthru
        _
    $region6: #{tpu_custom_call.1} parent=1 // loop_footer
      %s21 = sadd.s32 1, %s17
    $region7: #{tpu_custom_call.1} parent=1 // loop_footer_branch
      %16 = sbr.rel target = $region3
    $region8: #{tpu_custom_call.1} parent=1 // loop_exit
      _
    %324 = vsyncpa [#allocation3], 1
    %s325 = scalar_lea.sflag [#allocation3], 1
    %326 = vsyncpa %s325, 1
    %327 = vsyncpa [#allocation6], 1
    %s328 = scalar_lea.sflag [#allocation6], 1
    %329 = vsyncpa %s328, 1
    %330 = vsyncpa [#allocation4], 1
    %s331 = scalar_lea.sflag [#allocation4], 1
    %332 = vsyncpa %s331, 1

</llo_original>
